<compile_context>
chip_gen: v7x
topology: tpu7x:2x2x1
jax: 0.10.0
libtpu: 0.0.40
codegen_flags: <defaults>
</compile_context>

<pallas_src>
import math

import jax
import jax.numpy as jnp
from jax.experimental import pallas as pl
from jax.experimental.pallas import tpu as pltpu

_TWO_PI = 2.0 * math.pi
_R_BLK_CAP = 1024  # sublane-rows (of 128 lanes) per grid step -> <= 131072 batch rows/step


def _round_up(x, m):
    return ((x + m - 1) // m) * m


def _cdiv(a, b):
    return (a + b - 1) // b


# ----------------------------------------------------------------------------
# Kernels: batch packed across sublanes x lanes; dense full-vreg plane stores
# ----------------------------------------------------------------------------
def _euler2d_kernel(p_ref, q_ref):
    # p_ref: [1, r_blk, 128] raw angles in radians (no 2*pi scale, matching
    # get_2d_rotation).  q_ref: [4, r_blk, 128], row-major flatten of Q.
    theta = p_ref[0].astype(jnp.float32)
    s = jnp.sin(theta)
    c = jnp.cos(theta)
    # Q = [[cos, -sin], [sin, cos]]
    q_ref[0] = c
    q_ref[1] = -s
    q_ref[2] = s
    q_ref[3] = c


def _euler3d_kernel(p_ref, q_ref):
    # p_ref: [3, r_blk, 128] params in [-1, 1], scaled by 2*pi (matching
    # get_3d_rotation).  q_ref: [9, r_blk, 128], row-major flatten of Q.
    p = p_ref[...].astype(jnp.float32) * _TWO_PI
    s = jnp.sin(p)  # one EUP pass over the whole packed block
    c = jnp.cos(p)
    sa, sb, sg = s[0], s[1], s[2]
    ca, cb, cg = c[0], c[1], c[2]

    ca_sb = ca * sb
    r1_0 = ca * cb
    r1_1 = ca_sb * sg - sa * cg
    r1_2 = ca_sb * cg + sa * sg
    # NOTE: r2 duplicates r1 exactly as in the reference code (inherited bug:
    # columns 0 and 1 of Q are identical, so Q is not actually orthogonal).
    r3_0 = -sb
    r3_1 = cb * sg
    r3_2 = cb * cg

    # torch.stack([r1, r2, r3], dim=2) => Q[b, i, j] = r_{j+1}[b, i]
    # Row-major flatten; every store below is a dense (r_blk, 128) plane.
    q_ref[0] = r1_0   # Q[0,0] = r1_0
    q_ref[1] = r1_0   # Q[0,1] = r2_0 (== r1_0)
    q_ref[2] = r3_0   # Q[0,2] = r3_0
    q_ref[3] = r1_1   # Q[1,0] = r1_1
    q_ref[4] = r1_1   # Q[1,1] = r2_1 (== r1_1)
    q_ref[5] = r3_1   # Q[1,2] = r3_1
    q_ref[6] = r1_2   # Q[2,0] = r1_2
    q_ref[7] = r1_2   # Q[2,1] = r2_2 (== r1_2)
    q_ref[8] = r3_2   # Q[2,2] = r3_2


# ----------------------------------------------------------------------------
# Pure-JAX references (mirror the PyTorch math exactly); also the small-batch
# fallback path.
# ----------------------------------------------------------------------------
def _euler2d_ref(params):
    theta = params.astype(jnp.float32)          # [B, 1], raw radians
    s, c = jnp.sin(theta), jnp.cos(theta)
    row0 = jnp.concatenate([c, -s], axis=1)
    row1 = jnp.concatenate([s, c], axis=1)
    return jnp.stack([row0, row1], axis=1)      # [B, 2, 2]


def _euler3d_ref(params):
    p = params.astype(jnp.float32) * _TWO_PI
    a, b, g = p[:, 0:1], p[:, 1:2], p[:, 2:3]
    sa, ca = jnp.sin(a), jnp.cos(a)
    sb, cb = jnp.sin(b), jnp.cos(b)
    sg, cg = jnp.sin(g), jnp.cos(g)
    r1 = jnp.concatenate([ca * cb, ca * sb * sg - sa * cg, ca * sb * cg + sa * sg], axis=1)
    r2 = r1                                      # duplicated row, as in reference
    r3 = jnp.concatenate([-sb, cb * sg, cb * cg], axis=1)
    return jnp.stack([r1, r2, r3], axis=2)       # Q[b, i, j] = r_{j+1}[b, i]


# ----------------------------------------------------------------------------
# Wrapper module
# ----------------------------------------------------------------------------
class OrthogonalPallas:
    """Pallas port of Orthogonal (euler orthogonal_map)."""

    def __init__(self, d, orthogonal_map, min_pallas_batch=4096, batch_major_output=True):
        assert orthogonal_map in ["matrix_exp", "cayley", "householder", "euler"]
        self.d = d
        self.orthogonal_map = orthogonal_map
        # Below this batch size, plain fused XLA beats the kernel launch cost.
        self.min_pallas_batch = min_pallas_batch
        # batch_major_output=False returns Q as [d, d, B] (pure reshape of the
        # kernel output, no HBM relayout) for consumers that can fold the
        # transpose into a downstream contraction.
        self.batch_major_output = batch_major_output

    def __call__(self, params: jnp.ndarray) -> jnp.ndarray:
        if self.orthogonal_map == "householder":
            # TODO(synk): householder path depends on torch_householder_orgqr; not ported.
            raise NotImplementedError("householder map not implemented in Pallas port")
        if self.orthogonal_map != "euler":
            # Matches the reference forward(), which only handles householder/euler.
            raise ValueError(f"Unsupported transformations {self.orthogonal_map}")

        assert 2 <= self.d <= 3
        d = self.d
        B, in_cols = params.shape
        assert in_cols == (1 if d == 2 else 3)

        if B < self.min_pallas_batch:
            # Small batch: launch + DMA setup dominates -> fused pure-JAX path.
            q = (_euler2d_ref if d == 2 else _euler3d_ref)(params)
            return q if self.batch_major_output else jnp.moveaxis(q, 0, -1)

        out_cols = d * d

        # ---- block sizing: batch packed densely across sublanes x lanes ----
        R = _cdiv(B, 128)                        # sublane-rows of 128 lanes each
        n_blocks = max(1, _cdiv(R, _R_BLK_CAP))
        if R >= 16 and n_blocks < 2:
            n_blocks = 2                         # >= 2 "parallel" blocks -> v7x megacore
        r_blk = _round_up(_cdiv(R, n_blocks), 8)
        R_pad = _round_up(R, r_blk)
        Bp = R_pad * 128
        grid = (R_pad // r_blk,)

        # Input relayout (transpose + zero-pad) is small: in_cols/out_cols of
        # the output bytes.  Zero padding keeps sin/cos well-defined on the
        # discarded lanes.
        p_t = params.T                           # [in_cols, B]
        if Bp != B:
            p_t = jnp.pad(p_t, ((0, 0), (0, Bp - B)))
        p_t = p_t.reshape(in_cols, R_pad, 128)

        in_block_bytes = in_cols * r_blk * 128 * 4
        out_block_bytes = out_cols * r_blk * 128 * 4
        # Double-buffered in+out footprint plus headroom; explicit so v5e's
        # 16 MiB scoped default never bites, capped well under v7x's 64 MiB.
        vmem_limit = int(min(2 * (in_block_bytes + out_block_bytes) + (8 << 20), 48 << 20))

        kernel = _euler2d_kernel if d == 2 else _euler3d_kernel
        q = pl.pallas_call(
            kernel,
            out_shape=jax.ShapeDtypeStruct((out_cols, R_pad, 128), jnp.float32),
            grid=grid,
            # Leading dim equals the full array dim; (r_blk, 128) satisfies the
            # (8, 128) rule -> dense, unmasked tiles.
            in_specs=[pl.BlockSpec((in_cols, r_blk, 128), lambda i: (0, i, 0))],
            out_specs=pl.BlockSpec((out_cols, r_blk, 128), lambda i: (0, i, 0)),
            compiler_params=pltpu.CompilerParams(
                dimension_semantics=("parallel",),
                vmem_limit_bytes=vmem_limit,
            ),
            cost_estimate=pl.CostEstimate(
                flops=16 * Bp,
                transcendentals=2 * in_cols * Bp,
                bytes_accessed=(in_cols + out_cols) * Bp * 4,
            ),
        )(p_t)

        if not self.batch_major_output:
            # Zero-relayout view: Q[i, j, b] (batch on the trailing axis).
            return q.reshape(d, d, Bp)[..., :B]

        # Default: exact reference semantics [B, d, d].  This transpose is the
        # one remaining HBM relayout; set batch_major_output=False to skip it.
        return jnp.transpose(q, (1, 2, 0)).reshape(Bp, d, d)[:B]


if __name__ == "__main__":
    key = jax.random.PRNGKey(0)
    k2, k3, k4 = jax.random.split(key, 3)

    # --- Pallas path (min_pallas_batch=1 forces the kernel even at small B) ---
    B = 512
    params2 = jax.random.uniform(k2, (B, 1), minval=-1.0, maxval=1.0, dtype=jnp.float32)
    q2 = jax.block_until_ready(OrthogonalPallas(2, "euler", min_pallas_batch=1)(params2))
    assert q2.shape == (B, 2, 2)
    assert jnp.allclose(q2, _euler2d_ref(params2), atol=1e-5, rtol=1e-5)

    params3 = jax.random.uniform(k3, (B, 3), minval=-1.0, maxval=1.0, dtype=jnp.float32)
    q3 = jax.block_until_ready(OrthogonalPallas(3, "euler", min_pallas_batch=1)(params3))
    assert q3.shape == (B, 3, 3)
    assert jnp.allclose(q3, _euler3d_ref(params3), atol=1e-5, rtol=1e-5)

    # --- relayout-free output layout ([d, d, B]) matches after moveaxis ---
    q3_t = jax.block_until_ready(
        OrthogonalPallas(3, "euler", min_pallas_batch=1, batch_major_output=False)(params3))
    assert q3_t.shape == (3, 3, B)
    assert jnp.allclose(jnp.moveaxis(q3_t, -1, 0), q3, atol=1e-6, rtol=1e-6)

    # --- Pallas path with a non-multiple-of-128 batch (exercises padding) ---
    Bs = 16
    params3s = jax.random.uniform(k4, (Bs, 3), minval=-1.0, maxval=1.0, dtype=jnp.float32)
    q3s = jax.block_until_ready(OrthogonalPallas(3, "euler", min_pallas_batch=1)(params3s))
    assert q3s.shape == (Bs, 3, 3)
    assert jnp.allclose(q3s, _euler3d_ref(params3s), atol=1e-5, rtol=1e-5)

    # --- Default dispatch: small batch falls back to the fused pure-JAX path ---
    q3f = jax.block_until_ready(OrthogonalPallas(3, "euler")(params3s))
    assert q3f.shape == (Bs, 3, 3)
    assert jnp.allclose(q3f, _euler3d_ref(params3s), atol=1e-5, rtol=1e-5)

    print("KERNEL_OK")
</pallas_src>

<mosaic_0001>
module attributes {stable_mosaic.version = 11 : i64} {
  func.func @_euler2d_kernel(%arg0: i32, %arg1: memref<1x8x128xf32, #tpu.memory_space<vmem>>, %arg2: memref<4x8x128xf32, #tpu.memory_space<vmem>>) attributes {dimension_semantics = [#tpu.dimension_semantics<parallel>], iteration_bounds = array<i64: 1>, scalar_prefetch = 0 : i64, scratch_operands = 0 : i64, tpu.core_type = #tpu.core_type<tc>, window_params = [{transform_indices = @transform_0, window_bounds = array<i64: 1, 8, 128>}, {transform_indices = @transform_1, window_bounds = array<i64: 4, 8, 128>}]} {
    %c0 = arith.constant 0 : index
    %c0_0 = arith.constant 0 : index
    %c0_1 = arith.constant 0 : index
    %0 = vector.load %arg1[%c0, %c0_0, %c0_1] : memref<1x8x128xf32, #tpu.memory_space<vmem>>, vector<1x8x128xf32>
    %1 = vector.shape_cast %0 : vector<1x8x128xf32> to vector<8x128xf32>
    %2 = math.sin %1 : vector<8x128xf32>
    %3 = math.cos %1 : vector<8x128xf32>
    %c0_2 = arith.constant 0 : index
    %c0_3 = arith.constant 0 : index
    %c0_4 = arith.constant 0 : index
    %4 = vector.load %arg2[%c0_2, %c0_3, %c0_4] : memref<4x8x128xf32, #tpu.memory_space<vmem>>, vector<1x8x128xf32>
    %5 = vector.shape_cast %4 : vector<1x8x128xf32> to vector<8x128xf32>
    %6 = vector.shape_cast %3 : vector<8x128xf32> to vector<1x8x128xf32>
    tpu.vector_store %arg2[%c0_2, %c0_3, %c0_4], %6 {strides = array<i32>} : memref<4x8x128xf32, #tpu.memory_space<vmem>>, vector<1x8x128xf32>,
    %cst = arith.constant 0.000000e+00 : f32
    %7 = vector.broadcast %cst : f32 to vector<8x128xf32>
    %8 = arith.subf %7, %2 : vector<8x128xf32>
    %c1 = arith.constant 1 : index
    %c0_5 = arith.constant 0 : index
    %c0_6 = arith.constant 0 : index
    %9 = vector.load %arg2[%c1, %c0_5, %c0_6] : memref<4x8x128xf32, #tpu.memory_space<vmem>>, vector<1x8x128xf32>
    %10 = vector.shape_cast %9 : vector<1x8x128xf32> to vector<8x128xf32>
    %11 = vector.shape_cast %8 : vector<8x128xf32> to vector<1x8x128xf32>
    tpu.vector_store %arg2[%c1, %c0_5, %c0_6], %11 {strides = array<i32>} : memref<4x8x128xf32, #tpu.memory_space<vmem>>, vector<1x8x128xf32>,
    %c2 = arith.constant 2 : index
    %c0_7 = arith.constant 0 : index
    %c0_8 = arith.constant 0 : index
    %12 = vector.load %arg2[%c2, %c0_7, %c0_8] : memref<4x8x128xf32, #tpu.memory_space<vmem>>, vector<1x8x128xf32>
    %13 = vector.shape_cast %12 : vector<1x8x128xf32> to vector<8x128xf32>
    %14 = vector.shape_cast %2 : vector<8x128xf32> to vector<1x8x128xf32>
    tpu.vector_store %arg2[%c2, %c0_7, %c0_8], %14 {strides = array<i32>} : memref<4x8x128xf32, #tpu.memory_space<vmem>>, vector<1x8x128xf32>,
    %c3 = arith.constant 3 : index
    %c0_9 = arith.constant 0 : index
    %c0_10 = arith.constant 0 : index
    %15 = vector.load %arg2[%c3, %c0_9, %c0_10] : memref<4x8x128xf32, #tpu.memory_space<vmem>>, vector<1x8x128xf32>
    %16 = vector.shape_cast %15 : vector<1x8x128xf32> to vector<8x128xf32>
    %17 = vector.shape_cast %3 : vector<8x128xf32> to vector<1x8x128xf32>
    tpu.vector_store %arg2[%c3, %c0_9, %c0_10], %17 {strides = array<i32>} : memref<4x8x128xf32, #tpu.memory_space<vmem>>, vector<1x8x128xf32>,
    return
  }
  func.func @transform_0(%arg0: i32) -> (i32, i32, i32) {
    %c0_i32 = arith.constant 0 : i32
    %c0_i32_0 = arith.constant 0 : i32
    %c0_i32_1 = arith.constant 0 : i32
    return %c0_i32, %arg0, %c0_i32_0 : i32, i32, i32
  }
  func.func @transform_1(%arg0: i32) -> (i32, i32, i32) {
    %c0_i32 = arith.constant 0 : i32
    %c0_i32_0 = arith.constant 0 : i32
    %c0_i32_1 = arith.constant 0 : i32
    return %c0_i32, %arg0, %c0_i32_0 : i32, i32, i32
  }
}

</mosaic_0001>

<llo_original>
// kernel: tpu_custom_call.1
$region0: #{tpu_custom_call.1}
  #allocation0 [shape = 'u32[]', space=smem, size = 0x4, offset = 0x4, fixed_abs, tag = 'smem constant byte address 0x4 - core index']
  #allocation1 [shape = 'u32[144,128]{1,0:T(1,128)}', space=vmem, size = 0x12000, scoped, tag = 'internal scratch']
  %s0 = inlined_call_operand.hbm [shape: f32[1,8,128], index: 0, kind: input, shape index: {}]
  %s1 = inlined_call_operand.hbm [shape: f32[4,8,128], index: 1, kind: output, shape index: {}]
  %s2 = sld [smem:[#allocation0]]
  $region18: #{tpu_custom_call.1} parent=0
    _
  %s4 = ssub.s32 1, %s2
  %s5 = scalar_select 0, %s4, %s2
  $region1: #{tpu_custom_call.1} parent=0
    #allocation2 [shape = 'u8[4096]{0}', space=vmem, size = 0x1000, scoped, tag = 'input window, operand 0, single buffered']
    #allocation3 [shape = 's32[1]{0}', space=sflag, size = 0x4, scoped, tag = 'scoped memory for tpu_custom_call.1']
    #allocation4 [shape = 's32[1]{0}', space=sflag, size = 0x4, scoped, tag = 'scoped memory for tpu_custom_call.1']
    #allocation5 [shape = 'u8[16384]{0}', space=vmem, size = 0x4000, scoped, tag = 'output window, operand 0, single buffered']
    %6 = vsyncpa [#allocation3], 0
    %7 = vsyncpa [#allocation4], 0
    // Predicated region
    $region2: #{tpu_custom_call.1} parent=1 // pred_check
      _
    $region3: #{tpu_custom_call.1} parent=1 // pred_check_branch
      %9 = sbr.rel (0) target = $region5
    $region4: #{tpu_custom_call.1} parent=1 // pred_region
      %s11 = ssub.s32 128, 128
      %12 = vsyncadd [#allocation3], %s11
      %s14 = sshll.u32 [#allocation2], 4
      %s15 = int_to_ptr.vmem [resolvable:$true] %s14
      %17 = dma.hbm_to_vmem [thread:$0]  %s0, 128, %s15, [#allocation3]
    $region5: #{tpu_custom_call.1} parent=1 // pred_fallthru
      _
    // Predicated region
    $region6: #{tpu_custom_call.1} parent=1 // pred_check
      _
    $region7: #{tpu_custom_call.1} parent=1 // pred_check_branch
      %19 = sbr.rel (0) target = $region9
    $region8: #{tpu_custom_call.1} parent=1 // pred_region
      %20 = dma.done [#allocation3], 128
    $region9: #{tpu_custom_call.1} parent=1 // pred_fallthru
      _
    %v21 = vld [vmem:[#allocation2] sm:$0xff]
    %v22 = vand.u32 2147483647, %v21
    %vm23 = vcmp.le.f32.partialorder %v22, 0.7853982
    %vm24 = vcmp.lt.s32.totalorder %v21, 0
    %v25 = vand.u32 %v21, 2139095040
    %v26 = vshrl.u32 %v25, 23
    %v27 = vsub.s32 %v26, 127
    %v28 = vand.u32 2147483647, %v21
    %v29 = vand.u32 %v28, 8388607
    %v30 = vor.u32 %v29, 8388608
    %v31 = vsub.s32 0, %v30
    %v32 = vadd.s32 %v27, 1
    %vm33 = vcmp.gt.s32.totalorder %v32, 0
    %v34 = vsel %vm33, %v32, 0
    %v35 = vshrl.u32 %v34, 5
    %v36 = vand.u32 %v34, 31
    %v37 = vsub.s32 32, %v36
    %v38 = vshrl.u32 683565275, %v37
    %v39 = vshll.u32 683565275, %v36
    %v40 = vshrl.u32 2475754826, %v37
    %v41 = vor.u32 %v39, %v40
    %v42 = vshll.u32 2475754826, %v36
    %v43 = vshrl.u32 2131351028, %v37
    %v44 = vor.u32 %v42, %v43
    %v45 = vshll.u32 2131351028, %v36
    %v46 = vshrl.u32 2102212464, %v37
    %v47 = vor.u32 %v45, %v46
    %v48 = vshll.u32 2102212464, %v36
    %v49 = vshrl.u32 920167782, %v37
    %v50 = vor.u32 %v48, %v49
    %v51 = vshll.u32 920167782, %v36
    %v52 = vshrl.u32 1326507024, %v37
    %v53 = vor.u32 %v51, %v52
    %vm54 = vcmp.lt.s32.totalorder %v35, 1
    %vm55 = vcmp.lt.s32.totalorder %v35, 2
    %vm56 = vcmp.lt.s32.totalorder %v35, 3
    %vm57 = vcmp.lt.s32.totalorder %v35, 4
    %v58 = vsel %vm54, %v38, %v41
    %v59 = vsel %vm57, %v47, 2102212464
    %v60 = vsel %vm56, %v44, %v59
    %v61 = vsel %vm55, %v58, %v60
    %v62 = vsel %vm54, %v41, %v44
    %v63 = vsel %vm57, %v50, 920167782
    %v64 = vsel %vm56, %v47, %v63
    %v65 = vsel %vm55, %v62, %v64
    %v66 = vsel %vm54, %v44, %v47
    %v67 = vsel %vm57, %v53, 1326507024
    %v68 = vsel %vm56, %v50, %v67
    %v69 = vsel %vm55, %v66, %v68
    %v70 = vshll.u32 %v30, 8
    %v71 = vmul.u32.u64.compose %v70, %v69
    %v72 = vextract.low.u32 %v71
    %v73 = vextract.high.u32 %v71
    %v74 = vmul.u32.u64.compose %v70, %v65
    %v75 = vextract.low.u32 %v74
    %v76 = vextract.high.u32 %v74
    %v77 = vmul.u32 %v70, %v61
    %v78 = vadd.s32 %v73, %v75
    %vm79 = vc.u32 %v73, %v75
    %v80 = vadd.s32 %v76, 1
    %v81 = vsel %vm79, %v80, %v76
    %v82 = vadd.s32 %v77, %v81
    %v83 = vadd.s32 %v82, 536870912
    %v84 = vshrl.u32 %v83, 30
    %v85 = vshll.u32 %v84, 30
    %v86 = vsub.s32 %v82, %v85
    %vm87 = vcmp.lt.s32.totalorder %v86, 0
    %v88 = vsub.s32 0, %v86
    %v89 = vsel %vm87, %v88, %v86
    %v90 = vclz %v89
    %v91 = vsub.s32 %v90, 2
    %vm92 = vcmp.gt.s32.totalorder 0, %v91
    %v93 = vsel %vm92, 0, %v91
    %v94 = vsub.s32 32, %v93
    %v95 = vshll.u32 %v86, %v93
    %v96 = vshrl.u32 %v78, %v94
    %v97 = vor.u32 %v95, %v96
    %v98 = vsub.s32 4294967266, %v93
    %v99 = vadd.s32 %v98, 127
    %v100 = vshll.u32 %v99, 23
    %v101 = vor.u32 4788187, %v100
    %v102 = vand.u32 2147483647, %v101
    %v104 = vcvt.s32.f32 %v97
    %v105 = vmul.f32 %v104, %v102
    %v106 = vxor.u32 %v105, 2147483648
    %v107 = vsel %vm24, %v106, %v105
    %v108 = vsub.s32 4, %v84
    %v109 = vsel %vm24, %v108, %v84
    %v110 = vsel %vm23, %v21, %v107
    %v111 = vsel %vm23, 0, %v109
    %v112 = vcosq.f32.pop %v110
    %v113 = vsinq.f32.pop %v110
    %vm114 = vweird.f32 %v21
    %v115 = vadd.s32 %v111, 3
    %v116 = vand.u32 %v115, 3
    %vm117 = vcmp.lt.s32.totalorder %v116, 2
    %vm118 = vcmp.eq.s32.totalorder %v116, 0
    %v119 = vxor.u32 %v113, 2147483648
    %v120 = vsel %vm118, %v112, %v119
    %vm121 = vcmp.eq.s32.totalorder %v116, 2
    %v122 = vxor.u32 %v112, 2147483648
    %v123 = vsel %vm121, %v122, %v113
    %v124 = vsel %vm117, %v120, %v123
    %v125 = vsel %vm114, nan, %v124
    %v126 = vand.u32 2147483647, %v21
    %vm127 = vcmp.le.f32.partialorder %v126, 0.7853982
    %vm128 = vcmp.lt.s32.totalorder %v21, 0
    %v129 = vand.u32 %v21, 2139095040
    %v130 = vshrl.u32 %v129, 23
    %v131 = vsub.s32 %v130, 127
    %v132 = vand.u32 2147483647, %v21
    %v133 = vand.u32 %v132, 8388607
    %v134 = vor.u32 %v133, 8388608
    %v135 = vsub.s32 0, %v134
    %v136 = vadd.s32 %v131, 1
    %vm137 = vcmp.gt.s32.totalorder %v136, 0
    %v138 = vsel %vm137, %v136, 0
    %v139 = vshrl.u32 %v138, 5
    %v140 = vand.u32 %v138, 31
    %v141 = vsub.s32 32, %v140
    %v142 = vshrl.u32 683565275, %v141
    %v143 = vshll.u32 683565275, %v140
    %v144 = vshrl.u32 2475754826, %v141
    %v145 = vor.u32 %v143, %v144
    %v146 = vshll.u32 2475754826, %v140
    %v147 = vshrl.u32 2131351028, %v141
    %v148 = vor.u32 %v146, %v147
    %v149 = vshll.u32 2131351028, %v140
    %v150 = vshrl.u32 2102212464, %v141
    %v151 = vor.u32 %v149, %v150
    %v152 = vshll.u32 2102212464, %v140
    %v153 = vshrl.u32 920167782, %v141
    %v154 = vor.u32 %v152, %v153
    %v155 = vshll.u32 920167782, %v140
    %v156 = vshrl.u32 1326507024, %v141
    %v157 = vor.u32 %v155, %v156
    %vm158 = vcmp.lt.s32.totalorder %v139, 1
    %vm159 = vcmp.lt.s32.totalorder %v139, 2
    %vm160 = vcmp.lt.s32.totalorder %v139, 3
    %vm161 = vcmp.lt.s32.totalorder %v139, 4
    %v162 = vsel %vm158, %v142, %v145
    %v163 = vsel %vm161, %v151, 2102212464
    %v164 = vsel %vm160, %v148, %v163
    %v165 = vsel %vm159, %v162, %v164
    %v166 = vsel %vm158, %v145, %v148
    %v167 = vsel %vm161, %v154, 920167782
    %v168 = vsel %vm160, %v151, %v167
    %v169 = vsel %vm159, %v166, %v168
    %v170 = vsel %vm158, %v148, %v151
    %v171 = vsel %vm161, %v157, 1326507024
    %v172 = vsel %vm160, %v154, %v171
    %v173 = vsel %vm159, %v170, %v172
    %v174 = vshll.u32 %v134, 8
    %v175 = vmul.u32.u64.compose %v174, %v173
    %v176 = vextract.low.u32 %v175
    %v177 = vextract.high.u32 %v175
    %v178 = vmul.u32.u64.compose %v174, %v169
    %v179 = vextract.low.u32 %v178
    %v180 = vextract.high.u32 %v178
    %v181 = vmul.u32 %v174, %v165
    %v182 = vadd.s32 %v177, %v179
    %vm183 = vc.u32 %v177, %v179
    %v184 = vadd.s32 %v180, 1
    %v185 = vsel %vm183, %v184, %v180
    %v186 = vadd.s32 %v181, %v185
    %v187 = vadd.s32 %v186, 536870912
    %v188 = vshrl.u32 %v187, 30
    %v189 = vshll.u32 %v188, 30
    %v190 = vsub.s32 %v186, %v189
    %vm191 = vcmp.lt.s32.totalorder %v190, 0
    %v192 = vsub.s32 0, %v190
    %v193 = vsel %vm191, %v192, %v190
    %v194 = vclz %v193
    %v195 = vsub.s32 %v194, 2
    %vm196 = vcmp.gt.s32.totalorder 0, %v195
    %v197 = vsel %vm196, 0, %v195
    %v198 = vsub.s32 32, %v197
    %v199 = vshll.u32 %v190, %v197
    %v200 = vshrl.u32 %v182, %v198
    %v201 = vor.u32 %v199, %v200
    %v202 = vsub.s32 4294967266, %v197
    %v203 = vadd.s32 %v202, 127
    %v204 = vshll.u32 %v203, 23
    %v205 = vor.u32 4788187, %v204
    %v206 = vand.u32 2147483647, %v205
    %v208 = vcvt.s32.f32 %v201
    %v209 = vmul.f32 %v208, %v206
    %v210 = vxor.u32 %v209, 2147483648
    %v211 = vsel %vm128, %v210, %v209
    %v212 = vsub.s32 4, %v188
    %v213 = vsel %vm128, %v212, %v188
    %v214 = vsel %vm127, %v21, %v211
    %v215 = vsel %vm127, 0, %v213
    %v216 = vcosq.f32.pop %v214
    %v217 = vsinq.f32.pop %v214
    %vm218 = vweird.f32 %v21
    %v219 = vand.u32 %v215, 3
    %vm220 = vcmp.lt.s32.totalorder %v219, 2
    %vm221 = vcmp.eq.s32.totalorder %v219, 0
    %v222 = vxor.u32 %v217, 2147483648
    %v223 = vsel %vm221, %v216, %v222
    %vm224 = vcmp.eq.s32.totalorder %v219, 2
    %v225 = vxor.u32 %v216, 2147483648
    %v226 = vsel %vm224, %v225, %v217
    %v227 = vsel %vm220, %v223, %v226
    %v228 = vsel %vm218, nan, %v227
    %229 = vst [vmem:[#allocation5] sm:$0xff] %v228
    %v230 = vsub.f32 0.0, %v125
    %s231 = scalar_lea.vmem [#allocation5], 8
    %232 = vst [vmem:[%s231] sm:$0xff] %v230
    %s233 = scalar_lea.vmem [#allocation5], 16
    %234 = vst [vmem:[%s233] sm:$0xff] %v125
    %s235 = scalar_lea.vmem [#allocation5], 24
    %236 = vst [vmem:[%s235] sm:$0xff] %v228
    // Predicated region
    $region10: #{tpu_custom_call.1} parent=1 // pred_check
      _
    $region11: #{tpu_custom_call.1} parent=1 // pred_check_branch
      %238 = sbr.rel (0) target = $region13
    $region12: #{tpu_custom_call.1} parent=1 // pred_region
      %s240 = ssub.s32 512, 512
      %241 = vsyncadd [#allocation4], %s240
      %s242 = sshll.u32 [#allocation5], 4
      %s243 = int_to_ptr.vmem [resolvable:$true] %s242
      %248 = dma.vmem_to_hbm [thread:$0]  %s243, 512, %s1, [#allocation4], 128, 128, 8
    $region13: #{tpu_custom_call.1} parent=1 // pred_fallthru
      _
    // Predicated region
    $region14: #{tpu_custom_call.1} parent=1 // pred_check
      _
    $region15: #{tpu_custom_call.1} parent=1 // pred_check_branch
      %250 = sbr.rel (0) target = $region17
    $region16: #{tpu_custom_call.1} parent=1 // pred_region
      %251 = dma.done [#allocation4], 512
    $region17: #{tpu_custom_call.1} parent=1 // pred_fallthru
      _
    %252 = vsyncpa [#allocation3], 1
    %253 = vsyncpa [#allocation4], 1

</llo_original>
